<compile_context>
chip_gen: v7x
topology: tpu7x:2x2x1
jax: 0.10.0
libtpu: 0.0.40
codegen_flags: <defaults>
</compile_context>

<pallas_src>
import functools

import jax
import jax.numpy as jnp
from jax.experimental import pallas as pl
from jax.experimental.pallas import tpu as pltpu


def _round_up(a, b):
    return (a + b - 1) // b * b


def _pick_tile(dim_pad, max_tile):
    """Largest multiple of 128 that divides dim_pad and is <= max_tile."""
    t = min(max_tile, dim_pad)
    t -= t % 128
    t = max(t, 128)
    while dim_pad % t:
        t -= 128
    return t


def _chip_has_int8_mxu():
    """v5e/v6e (and older) have a native int8 MXU path; v7x does not."""
    try:
        kind = jax.devices()[0].device_kind.lower().replace(" ", "")
    except Exception:
        return True
    return not ("v7" in kind or "tpu7" in kind)


# -----------------------------------------------------------------------------
# Pallas kernels: tiled quantized matmul + fused dequant/bias
# -----------------------------------------------------------------------------
def _make_dynq_kernel(nk, use_int8_mxu):
    def _tile_dot(x_tile, w_tile):
        if use_int8_mxu:
            # Native int8 x int8 -> int32 MXU path (v5e/v6e): no per-step VALU
            # casts, exact int32 accumulation (matches torch).
            return jnp.dot(x_tile, w_tile, preferred_element_type=jnp.int32)
        # v7x: no integer MXU.  Weight is already bf16 (cast once at weight-quant
        # time); only the activation tile is cast here (|v| <= 128 -> exact).
        return jnp.dot(x_tile.astype(jnp.bfloat16), w_tile,
                       preferred_element_type=jnp.float32)

    if nk == 1:
        # Single-K-block fast path: no accumulator scratch, no init/finalize.
        def kernel(xq_ref, wq_ref, scale_ref, bias_ref, o_ref):
            acc = _tile_dot(xq_ref[...], wq_ref[...])
            o_ref[...] = acc.astype(jnp.float32) * scale_ref[...] + bias_ref[...]
        return kernel

    def kernel(xq_ref, wq_ref, scale_ref, bias_ref, o_ref, acc_ref):
        k = pl.program_id(2)

        @pl.when(k == 0)
        def _init():
            acc_ref[...] = jnp.zeros_like(acc_ref)

        acc_ref[...] += _tile_dot(xq_ref[...], wq_ref[...])

        @pl.when(k == nk - 1)
        def _finalize():
            # scale_ref[0, n] = x_scale * w_scale[n]
            # bias_ref[0, n]  = bias[n] - x_scale*w_scale[n]*x_zp*colsum(w_q)[n]
            o_ref[...] = (acc_ref[...].astype(jnp.float32) * scale_ref[...]
                          + bias_ref[...])

    return kernel


# -----------------------------------------------------------------------------
# One-time weight quantization (done ahead of time, NOT per forward call)
# -----------------------------------------------------------------------------
def quantize_weight_per_channel(weight, bias, *, use_int8_mxu=None):
    """Per-channel symmetric int8 quantization of an [N, K] weight + padding."""
    if use_int8_mxu is None:
        use_int8_mxu = _chip_has_int8_mxu()

    weight = jnp.asarray(weight, jnp.float32)
    bias = jnp.asarray(bias, jnp.float32)
    N, K = weight.shape

    w_maxabs = jnp.maximum(jnp.max(jnp.abs(weight), axis=1), 1e-8)        # [N]
    w_scale = w_maxabs / 127.5                                            # [N]
    w_q = jnp.clip(jnp.round(weight / w_scale[:, None]), -128.0, 127.0)   # [N, K]
    w_colsum = jnp.sum(w_q, axis=1)                                       # [N]

    N_pad = _round_up(N, 128)
    K_pad = _round_up(K, 128)

    # v5e/v6e: int8 weight feeds the integer MXU directly.
    # v7x: pre-cast to bf16 ONCE so the kernel never casts the weight tile
    # (quantized values are small integers -> exact in bf16).
    w_store_dtype = jnp.int8 if use_int8_mxu else jnp.bfloat16
    wq_t = (jnp.zeros((K_pad, N_pad), w_store_dtype)
            .at[:K, :N].set(w_q.T.astype(w_store_dtype)))

    w_scale_p = jnp.zeros((N_pad,), jnp.float32).at[:N].set(w_scale)
    w_colsum_p = jnp.zeros((N_pad,), jnp.float32).at[:N].set(w_colsum)
    bias_p = jnp.zeros((N_pad,), jnp.float32).at[:N].set(bias)

    return dict(wq_t=wq_t, w_scale=w_scale_p, w_colsum=w_colsum_p,
                bias=bias_p, N=N, K=K)


# -----------------------------------------------------------------------------
# Forward pass (per call): dynamic activation quant (global reduction) + kernel
# -----------------------------------------------------------------------------
@functools.partial(jax.jit, static_argnames=("N", "K"))
def _dynq_linear_forward(x, wq_t, w_scale, w_colsum, bias, *, N, K):
    use_int8_mxu = (wq_t.dtype == jnp.int8)   # static (dtype is trace-time info)
    x = x.astype(jnp.float32)
    M = x.shape[0]
    K_pad, N_pad = wq_t.shape

    # ---- dynamic per-tensor asymmetric activation quantization (qint8) ------
    qmin, qmax = -128.0, 127.0
    # The two reductions fuse into a single HBM pass (XLA multi-output fusion).
    x_min = jnp.minimum(jnp.min(x), 0.0)    # torch: range always includes 0
    x_max = jnp.maximum(jnp.max(x), 0.0)
    x_scale = (x_max - x_min) / (qmax - qmin)
    x_scale = jnp.where(x_scale <= 0.0, jnp.float32(0.1), x_scale)  # degenerate guard
    # TODO(synk): torch computes zp as qmin - round(x_min/scale); this rounds the
    # whole expression -- can differ by 1 LSB on exact ties.
    x_zp = jnp.clip(jnp.round(qmin - x_min / x_scale), qmin, qmax)

    # ---- tile selection ------------------------------------------------------
    tm = min(512, _round_up(max(M, 1), 32))
    M_pad = _round_up(M, tm)
    tn = _pick_tile(N_pad, 1024)
    tk = _pick_tile(K_pad, 1024)
    if (not use_int8_mxu) and (M_pad // tm) * (N_pad // tn) == 1 and N_pad >= 256:
        # v7x has 2 TensorCores: expose >= 2 blocks on the parallel grid axes.
        tn = _pick_tile(N_pad, N_pad // 2)

    # ---- quantize straight into the padded int8 buffer (fused by XLA) -------
    x_q = jnp.clip(jnp.round(x / x_scale) + x_zp, qmin, qmax).astype(jnp.int8)
    if M_pad != M or K_pad != K:
        x_q = jnp.zeros((M_pad, K_pad), jnp.int8).at[:M, :K].set(x_q)

    # ---- fold dequant + zero-point correction into one row-mul + row-add ----
    # (padded K rows of the weight are zero, so zero-padded activations are inert)
    dq_scale = (x_scale * w_scale).reshape(1, N_pad)
    fused_bias = (bias - x_scale * w_scale * x_zp * w_colsum).reshape(1, N_pad)

    gm, gn, gk = M_pad // tm, N_pad // tn, K_pad // tk
    grid = (gm, gn, gk)

    w_itemsize = 1 if use_int8_mxu else 2
    acc_dtype = jnp.int32 if use_int8_mxu else jnp.float32
    scratch_shapes = [] if gk == 1 else [pltpu.VMEM((tm, tn), acc_dtype)]

    # Explicit VMEM budget: double-buffered inputs/outputs + accumulator.
    # Stays well under v7x's 64 MiB even at the largest tile config.
    vmem_bytes = (2 * tm * tk * 1 + 2 * tk * tn * w_itemsize
                  + 2 * tm * tn * 4 + tm * tn * 4 + 4 * tn * 4)
    vmem_limit = min(48 * 1024 * 1024,
                     max(32 * 1024 * 1024, int(vmem_bytes * 3 // 2)))

    cost = pl.CostEstimate(
        flops=2 * M_pad * N_pad * K_pad,
        transcendentals=0,
        bytes_accessed=(M_pad * K_pad * gn                   # int8 x, re-read per N-block
                        + K_pad * N_pad * w_itemsize * gm    # weight, re-read per M-block
                        + 4 * M_pad * N_pad                  # f32 output
                        + 2 * 4 * N_pad * gm * gk),          # dequant rows
    )

    kernel = _make_dynq_kernel(gk, use_int8_mxu)

    out = pl.pallas_call(
        kernel,
        out_shape=jax.ShapeDtypeStruct((M_pad, N_pad), jnp.float32),
        grid_spec=pltpu.PrefetchScalarGridSpec(
            num_scalar_prefetch=0,
            grid=grid,
            in_specs=[
                pl.BlockSpec((tm, tk), lambda i, j, k: (i, k)),   # x_q
                # NOTE: on v5e (slowest HBM), if profiling shows exposed weight
                # DMA for small-M calls, add pipeline_mode=pl.Buffered(3) here.
                pl.BlockSpec((tk, tn), lambda i, j, k: (k, j)),   # w_q^T (int8/bf16)
                pl.BlockSpec((1, tn), lambda i, j, k: (0, j)),    # dequant scale row
                pl.BlockSpec((1, tn), lambda i, j, k: (0, j)),    # fused bias row
            ],
            out_specs=pl.BlockSpec((tm, tn), lambda i, j, k: (i, j)),
            scratch_shapes=scratch_shapes,
        ),
        compiler_params=pltpu.CompilerParams(
            dimension_semantics=("parallel", "parallel", "arbitrary"),
            vmem_limit_bytes=vmem_limit),
        cost_estimate=cost,
    )(x_q, wq_t, dq_scale, fused_bias)

    return out[:M, :N]


def dyn_quant_linear_per_channel(x, params):
    """Forward of the dynamic-quantized per-channel Linear (torch module analogue)."""
    x = jnp.asarray(x)
    lead = x.shape[:-1]
    x2 = x.reshape((-1, x.shape[-1]))
    y = _dynq_linear_forward(
        x2, params["wq_t"], params["w_scale"], params["w_colsum"], params["bias"],
        N=params["N"], K=params["K"])
    return y.reshape(lead + (params["N"],))


if __name__ == "__main__":
    in_features = 32
    out_features = 16
    batch = 8

    key = jax.random.PRNGKey(0)
    kx, kw, kb = jax.random.split(key, 3)

    # nn.Linear(in_features, out_features)-shaped deterministic parameters.
    x = jax.random.normal(kx, (batch, in_features), dtype=jnp.float32)
    weight = jax.random.normal(kw, (out_features, in_features), dtype=jnp.float32) * 0.1
    bias = jax.random.normal(kb, (out_features,), dtype=jnp.float32) * 0.1

    # Weight quantization happens once, ahead of time (module __init__ analogue).
    params = quantize_weight_per_channel(weight, bias)

    y = dyn_quant_linear_per_channel(x, params)
    y = jax.block_until_ready(y)
    assert y.shape == (batch, out_features)

    # Reference 1: the same quantized math in pure JAX (should match to f32 rounding).
    w_maxabs = jnp.maximum(jnp.max(jnp.abs(weight), axis=1), 1e-8)
    w_scale = w_maxabs / 127.5
    w_q = jnp.clip(jnp.round(weight / w_scale[:, None]), -128.0, 127.0)
    x_min = jnp.minimum(jnp.min(x), 0.0)
    x_max = jnp.maximum(jnp.max(x), 0.0)
    x_scale = (x_max - x_min) / 255.0
    x_scale = jnp.where(x_scale <= 0.0, jnp.float32(0.1), x_scale)
    x_zp = jnp.clip(jnp.round(-128.0 - x_min / x_scale), -128.0, 127.0)
    x_q = jnp.clip(jnp.round(x / x_scale) + x_zp, -128.0, 127.0)
    y_ref_q = (x_scale * w_scale[None, :]) * ((x_q - x_zp) @ w_q.T) + bias[None, :]
    err_q = float(jnp.max(jnp.abs(y - y_ref_q)))
    assert err_q < 1e-3, f"kernel diverges from quantized reference: {err_q}"

    # Reference 2: the fp32 linear this module approximates (loose sanity bound).
    y_fp = x @ weight.T + bias
    err_fp = float(jnp.max(jnp.abs(y - y_fp)))
    assert err_fp < 0.15, f"quantized linear too far from fp32 reference: {err_fp}"

    print("KERNEL_OK")
</pallas_src>

<mosaic_0001>
module attributes {stable_mosaic.version = 11 : i64} {
  func.func @kernel(%arg0: i32, %arg1: i32, %arg2: i32, %arg3: memref<32x128xi8, #tpu.memory_space<vmem>>, %arg4: memref<128x128xi8, #tpu.memory_space<vmem>>, %arg5: memref<1x128xf32, #tpu.memory_space<vmem>>, %arg6: memref<1x128xf32, #tpu.memory_space<vmem>>, %arg7: memref<32x128xf32, #tpu.memory_space<vmem>>) attributes {dimension_semantics = [#tpu.dimension_semantics<parallel>, #tpu.dimension_semantics<parallel>, #tpu.dimension_semantics<arbitrary>], iteration_bounds = array<i64: 1, 1, 1>, scalar_prefetch = 0 : i64, scratch_operands = 0 : i64, tpu.core_type = #tpu.core_type<tc>, window_params = [{transform_indices = @transform_0, window_bounds = array<i64: 32, 128>}, {transform_indices = @transform_1, window_bounds = array<i64: 128, 128>}, {transform_indices = @transform_2, window_bounds = array<i64: 1, 128>}, {transform_indices = @transform_3, window_bounds = array<i64: 1, 128>}, {transform_indices = @transform_4, window_bounds = array<i64: 32, 128>}]} {
    %c0 = arith.constant 0 : index
    %c0_0 = arith.constant 0 : index
    %0 = vector.load %arg3[%c0, %c0_0] : memref<32x128xi8, #tpu.memory_space<vmem>>, vector<32x128xi8>
    %c0_1 = arith.constant 0 : index
    %c0_2 = arith.constant 0 : index
    %1 = vector.load %arg4[%c0_1, %c0_2] : memref<128x128xi8, #tpu.memory_space<vmem>>, vector<128x128xi8>
    %cst = arith.constant dense<0> : vector<32x128xi32>
    %2 = tpu.matmul %0, %1, %cst {dimension_numbers = #tpu.dot_dimension_numbers<[1], [0], [0], [1], [0, 0, 1, 1], [], []>} : vector<32x128xi8>, vector<128x128xi8>, vector<32x128xi32> -> vector<32x128xi32>
    %3 = arith.sitofp %2 : vector<32x128xi32> to vector<32x128xf32>
    %c0_3 = arith.constant 0 : index
    %c0_4 = arith.constant 0 : index
    %4 = vector.load %arg5[%c0_3, %c0_4] : memref<1x128xf32, #tpu.memory_space<vmem>>, vector<1x128xf32>
    %5 = vector.broadcast %4 : vector<1x128xf32> to vector<32x128xf32>
    %6 = arith.mulf %3, %5 : vector<32x128xf32>
    %c0_5 = arith.constant 0 : index
    %c0_6 = arith.constant 0 : index
    %7 = vector.load %arg6[%c0_5, %c0_6] : memref<1x128xf32, #tpu.memory_space<vmem>>, vector<1x128xf32>
    %8 = vector.broadcast %7 : vector<1x128xf32> to vector<32x128xf32>
    %9 = arith.addf %6, %8 : vector<32x128xf32>
    %c0_7 = arith.constant 0 : index
    %c0_8 = arith.constant 0 : index
    %10 = vector.load %arg7[%c0_7, %c0_8] : memref<32x128xf32, #tpu.memory_space<vmem>>, vector<32x128xf32>
    tpu.vector_store %arg7[%c0_7, %c0_8], %9 {strides = array<i32>} : memref<32x128xf32, #tpu.memory_space<vmem>>, vector<32x128xf32>,
    return
  }
  func.func @transform_0(%arg0: i32, %arg1: i32, %arg2: i32) -> (i32, i32) {
    %c0_i32 = arith.constant 0 : i32
    return %arg0, %arg2 : i32, i32
  }
  func.func @transform_1(%arg0: i32, %arg1: i32, %arg2: i32) -> (i32, i32) {
    %c0_i32 = arith.constant 0 : i32
    return %arg2, %arg1 : i32, i32
  }
  func.func @transform_2(%arg0: i32, %arg1: i32, %arg2: i32) -> (i32, i32) {
    %c0_i32 = arith.constant 0 : i32
    %c0_i32_0 = arith.constant 0 : i32
    return %c0_i32, %arg1 : i32, i32
  }
  func.func @transform_3(%arg0: i32, %arg1: i32, %arg2: i32) -> (i32, i32) {
    %c0_i32 = arith.constant 0 : i32
    %c0_i32_0 = arith.constant 0 : i32
    return %c0_i32, %arg1 : i32, i32
  }
  func.func @transform_4(%arg0: i32, %arg1: i32, %arg2: i32) -> (i32, i32) {
    %c0_i32 = arith.constant 0 : i32
    return %arg0, %arg1 : i32, i32
  }
}

</mosaic_0001>

<llo_original>
// kernel: _dynq_linear_forward.1
$region0: #{_dynq_linear_forward.1}
  #allocation0 [shape = 'u32[]', space=smem, size = 0x4, offset = 0x4, fixed_abs, tag = 'smem constant byte address 0x4 - core index']
  #allocation1 [shape = 'u32[144,128]{1,0:T(1,128)}', space=vmem, size = 0x12000, scoped, tag = 'internal scratch']
  %s0 = inlined_call_operand.vmem [shape: s8[32,128], index: 0, kind: input, shape index: {}]
  %s1 = inlined_call_operand.vmem [shape: s8[128,128], index: 1, kind: input, shape index: {}]
  %s2 = inlined_call_operand.vmem [shape: f32[1,128], index: 2, kind: input, shape index: {}]
  %s3 = inlined_call_operand.vmem [shape: f32[1,128], index: 3, kind: input, shape index: {}]
  %s4 = inlined_call_operand.vmem [shape: f32[32,128], index: 4, kind: output, shape index: {}]
  %s5 = sld [smem:[#allocation0]]
  $region26: #{_dynq_linear_forward.1} parent=0
    _
  %s7 = ssub.s32 1, %s5
  %s8 = scalar_select 0, %s7, %s5
  // Predicated region
  $region2: #{_dynq_linear_forward.1} parent=0 // pred_check
    _
  $region3: #{_dynq_linear_forward.1} parent=0 // pred_check_branch
    %10 = sbr.rel (0) target = $region5
  $region4: #{_dynq_linear_forward.1} parent=0 // pred_region
    _
  $region5: #{_dynq_linear_forward.1} parent=0 // pred_fallthru
    _
  // Predicated region
  $region6: #{_dynq_linear_forward.1} parent=0 // pred_check
    _
  $region7: #{_dynq_linear_forward.1} parent=0 // pred_check_branch
    %12 = sbr.rel (0) target = $region9
  $region8: #{_dynq_linear_forward.1} parent=0 // pred_region
    _
  $region9: #{_dynq_linear_forward.1} parent=0 // pred_fallthru
    _
  // Predicated region
  $region10: #{_dynq_linear_forward.1} parent=0 // pred_check
    _
  $region11: #{_dynq_linear_forward.1} parent=0 // pred_check_branch
    %14 = sbr.rel (0) target = $region13
  $region12: #{_dynq_linear_forward.1} parent=0 // pred_region
    _
  $region13: #{_dynq_linear_forward.1} parent=0 // pred_fallthru
    _
  // Predicated region
  $region14: #{_dynq_linear_forward.1} parent=0 // pred_check
    _
  $region15: #{_dynq_linear_forward.1} parent=0 // pred_check_branch
    %16 = sbr.rel (0) target = $region17
  $region16: #{_dynq_linear_forward.1} parent=0 // pred_region
    _
  $region17: #{_dynq_linear_forward.1} parent=0 // pred_fallthru
    _
  %v18 = vld [vmem:[%s0] sm:$0xff]
  %v19 = vld [vmem:[%s1] sm:$0xff]
  %v20 = vld [vmem:[%s1 + $0x8] sm:$0xff]
  %v21 = vld [vmem:[%s1 + $0x10] sm:$0xff]
  %v22 = vld [vmem:[%s1 + $0x18] sm:$0xff]
  %v23 = vunpack.c.l.s8.bf16 %v18
  %v24 = vunpack.c.h.s8.bf16 %v18
  %v25 = vunpack.c.l.s8.bf16 %v19
  %v26 = vunpack.c.h.s8.bf16 %v19
  %v27 = vunpack.c.l.s8.bf16 %v20
  %v28 = vunpack.c.h.s8.bf16 %v20
  %v29 = vunpack.c.l.s8.bf16 %v21
  %v30 = vunpack.c.h.s8.bf16 %v21
  %v31 = vunpack.c.l.s8.bf16 %v22
  %v32 = vunpack.c.h.s8.bf16 %v22
  %v33 = vcvt.s32.f32 0
  %34 = vmatprep.subr.bf16.mxu0 0
  %35 = vmatpush1.bf16.msra.mxu0 %v25
  %36 = vmatprep.subr.bf16.mxu0 0
  %37 = vmatpush1.bf16.msra.mxu0 %v26
  %38 = vmatprep.subr.bf16.mxu0 0
  %39 = vmatpush1.bf16.msra.mxu0 %v27
  %40 = vmatprep.subr.bf16.mxu0 0
  %41 = vmatpush1.bf16.msra.mxu0 %v28
  %42 = vmatprep.subr.bf16.mxu0 0
  %43 = vmatpush1.bf16.msra.mxu0 %v29
  %44 = vmatprep.subr.bf16.mxu0 0
  %45 = vmatpush1.bf16.msra.mxu0 %v30
  %46 = vmatprep.subr.bf16.mxu0 0
  %47 = vmatpush1.bf16.msra.mxu0 %v31
  %48 = vmatprep.subr.bf16.mxu0 0
  %49 = vmatpush1.bf16.msra.mxu0 %v32
  %50 = vmatprep.subr.bf16.mxu0 0
  %51 = vmatpush1.bf16.msra.mxu0 0
  %52 = vmatprep.subr.bf16.mxu0 0
  %53 = vmatpush1.bf16.msra.mxu0 0
  %54 = vmatprep.subr.bf16.mxu0 0
  %55 = vmatpush1.bf16.msra.mxu0 0
  %56 = vmatprep.subr.bf16.mxu0 0
  %57 = vmatpush1.bf16.msra.mxu0 0
  %58 = vmatprep.subr.bf16.mxu0 0
  %59 = vmatpush1.bf16.msra.mxu0 0
  %60 = vmatprep.subr.bf16.mxu0 0
  %61 = vmatpush1.bf16.msra.mxu0 0
  %62 = vmatprep.subr.bf16.mxu0 0
  %63 = vmatpush1.bf16.msra.mxu0 0
  %64 = vmatprep.subr.bf16.mxu0 0
  %65 = vmatpush1.bf16.msra.mxu0 0
  %66 = vmatprep.mubr.bf16.mxu0 0
  %67 = vmatmul.mubr.bf16.gmra.mrb[0].mxu0 %v23
  %v68 = vpop.f32.mrb[0].mxu0
  %v69 = vadd.f32 %v33, %v68
  %v70 = vpop.f32.mrb[0].mxu0
  %v71 = vpop.f32.mrb[0].mxu0
  %v72 = vadd.f32 %v33, %v71
  %v73 = vpop.f32.mrb[0].mxu0
  %74 = vmatprep.mubr.bf16.mxu0 0
  %75 = vmatmul.mubr.bf16.gmra.mrb[0].mxu0 %v24
  %v76 = vpop.f32.mrb[0].mxu0
  %v77 = vadd.f32 %v33, %v76
  %v78 = vpop.f32.mrb[0].mxu0
  %v79 = vpop.f32.mrb[0].mxu0
  %v80 = vadd.f32 %v33, %v79
  %v81 = vpop.f32.mrb[0].mxu0
  %82 = vdwg.mxu0
  %v83 = vcvt.f32.s32.to.zero.pseudo %v69
  %v84 = vcvt.f32.s32.to.zero.pseudo %v72
  %v85 = vcvt.f32.s32.to.zero.pseudo %v77
  %v86 = vcvt.f32.s32.to.zero.pseudo %v80
  %v87 = vcvt.s32.f32 %v83
  %v88 = vcvt.s32.f32 %v84
  %v89 = vcvt.s32.f32 %v85
  %v90 = vcvt.s32.f32 %v86
  %v91 = vld [vmem:[%s2] sm:$0x1]
  %v93 = vlaneseq
  %v94 = vshrl.u32 %v93, 7
  %v95 = vsub.s32 0, %v94
  %v96 = vrot.slane %v91, %v95
  %v98 = vmul.f32 %v87, %v96
  %v99 = vmul.f32 %v88, %v96
  %v100 = vmul.f32 %v89, %v96
  %v101 = vmul.f32 %v90, %v96
  %v102 = vld [vmem:[%s3] sm:$0x1]
  %v104 = vlaneseq
  %v105 = vshrl.u32 %v104, 7
  %v106 = vsub.s32 0, %v105
  %v107 = vrot.slane %v102, %v106
  %v109 = vadd.f32 %v98, %v107
  %v110 = vadd.f32 %v99, %v107
  %v111 = vadd.f32 %v100, %v107
  %v112 = vadd.f32 %v101, %v107
  %113 = vst [vmem:[%s4] sm:$0xff] %v109
  %114 = vst [vmem:[%s4 + $0x8] sm:$0xff] %v110
  %115 = vst [vmem:[%s4 + $0x10] sm:$0xff] %v111
  %116 = vst [vmem:[%s4 + $0x18] sm:$0xff] %v112
  // Predicated region
  $region18: #{_dynq_linear_forward.1} parent=0 // pred_check
    _
  $region19: #{_dynq_linear_forward.1} parent=0 // pred_check_branch
    %118 = sbr.rel (0) target = $region21
  $region20: #{_dynq_linear_forward.1} parent=0 // pred_region
    _
  $region21: #{_dynq_linear_forward.1} parent=0 // pred_fallthru
    _
  // Predicated region
  $region22: #{_dynq_linear_forward.1} parent=0 // pred_check
    _
  $region23: #{_dynq_linear_forward.1} parent=0 // pred_check_branch
    %120 = sbr.rel (0) target = $region25
  $region24: #{_dynq_linear_forward.1} parent=0 // pred_region
    _
  $region25: #{_dynq_linear_forward.1} parent=0 // pred_fallthru
    _

</llo_original>
